<compile_context>
chip_gen: v7x
topology: tpu7x:2x2x1
jax: 0.10.0
libtpu: 0.0.40
codegen_flags: <defaults>
</compile_context>

<pallas_src>
import functools
import math

import jax
import jax.numpy as jnp
from jax.experimental import pallas as pl
from jax.experimental.pallas import tpu as pltpu


# -----------------------------------------------------------------------------
# Padding helpers (mirror get_extra_padding_for_conv1d / pad1d semantics)
# -----------------------------------------------------------------------------
def _get_extra_padding_for_conv1d(length, kernel_size, stride, padding_total):
    # Integer version of:
    #   n_frames = (length - kernel_size + padding_total) / stride + 1
    #   ideal    = (ceil(n_frames) - 1) * stride + (kernel_size - padding_total)
    a = length - kernel_size + padding_total
    n_frames_ceil = -(-a // stride) + 1                 # ceil(a/stride) + 1
    ideal_length = (n_frames_ceil - 1) * stride + (kernel_size - padding_total)
    return ideal_length - length


def _pad1d(x, paddings, mode="zero", value=0.0):
    """x: (B, C, T). Pad only the last axis (torch F.pad-compatible reflect handling)."""
    length = x.shape[-1]
    padding_left, padding_right = paddings
    assert padding_left >= 0 and padding_right >= 0
    if mode == "reflect":
        max_pad = max(padding_left, padding_right)
        extra_pad = 0
        if length <= max_pad:
            extra_pad = max_pad - length + 1
            x = jnp.pad(x, ((0, 0), (0, 0), (0, extra_pad)))
        padded = jnp.pad(x, ((0, 0), (0, 0), (padding_left, padding_right)), mode="reflect")
        end = padded.shape[-1] - extra_pad
        return padded[..., :end]
    return jnp.pad(x, ((0, 0), (0, 0), (padding_left, padding_right)),
                   mode="constant", constant_values=value)


def _sconv_pad(x, kernel_size, stride, dilation, causal, pad_mode):
    """Exactly the SConv1d.forward padding logic (static shapes -> python ints)."""
    T = x.shape[-1]
    k_eff = (kernel_size - 1) * dilation + 1
    padding_total = k_eff - stride
    extra = _get_extra_padding_for_conv1d(T, k_eff, stride, padding_total)
    if causal:
        return _pad1d(x, (padding_total, extra), mode=pad_mode)
    padding_right = padding_total // 2
    padding_left = padding_total - padding_right
    return _pad1d(x, (padding_left, padding_right + extra), mode=pad_mode)


# -----------------------------------------------------------------------------
# Tiling (generation-aware VMEM budget)
# -----------------------------------------------------------------------------
def _round_up(n, m):
    return ((n + m - 1) // m) * m


@functools.lru_cache(maxsize=1)
def _vmem_capacity_bytes():
    try:
        info = pltpu.get_tpu_info()
        cap = int(getattr(info, "vmem_capacity_bytes", 0))
        if cap > 0:
            return cap
    except Exception:
        pass
    return 64 * 2 ** 20        # safe lower bound: v7x per-TensorCore VMEM


def _choose_tiling(CK, c_out, t_out, in_itemsize, out_itemsize, has_res, pre_elu, budget):
    """Return (co_tile, t_tile, ck_tile, est_vmem_bytes)."""
    pack = 8 if in_itemsize >= 4 else 16               # dtype-aware sublane packing
    co_tile = min(_round_up(c_out, pack), 256)
    t_cap = _round_up(t_out, 128)

    def vmem_bytes(t_tile, ck_tile):
        cols = 2 * ck_tile * t_tile * in_itemsize       # double-buffered cols block
        wgt = 2 * co_tile * ck_tile * in_itemsize       # double-buffered weight block
        bias = 2 * co_tile * 4
        outb = 2 * co_tile * t_tile * out_itemsize
        resb = 2 * co_tile * t_tile * out_itemsize if has_res else 0
        acc = co_tile * t_tile * 4
        elu = 2 * ck_tile * t_tile * in_itemsize if pre_elu else 0   # elementwise temps
        return cols + wgt + bias + outb + resb + acc + elu

    # Preferred: single contraction tile -> weight resident across all T tiles.
    ck_single = _round_up(CK, pack)
    for t_tile in (2048, 1024, 512, 256, 128):
        t_tile = min(t_tile, t_cap)
        if vmem_bytes(t_tile, ck_single) <= budget:
            return co_tile, t_tile, ck_single, vmem_bytes(t_tile, ck_single)
    # Fallback: split the contraction into 128-multiple tiles.
    for ck_tile in (2048, 1024, 512, 256, 128):
        for t_tile in (1024, 512, 256, 128):
            t_tile = min(t_tile, t_cap)
            if vmem_bytes(t_tile, ck_tile) <= budget:
                return co_tile, t_tile, ck_tile, vmem_bytes(t_tile, ck_tile)
    return co_tile, 128, 128, vmem_bytes(128, 128)


# -----------------------------------------------------------------------------
# im2col (wrapper-side, tile padding folded in):
#   (B, C, L) -> (B, ck_pad, t_pad), cols[b, k*C + c, t] = x_pad[b, c, t*stride + k*dil]
# -----------------------------------------------------------------------------
def _im2col(x_pad, kernel_size, stride, dilation, t_pad, ck_pad):
    B, C, L = x_pad.shape
    k_eff = (kernel_size - 1) * dilation + 1
    need = (t_pad - 1) * stride + k_eff
    if need > L:
        x_pad = jnp.pad(x_pad, ((0, 0), (0, 0), (0, need - L)))
    span = (t_pad - 1) * stride + 1
    taps = [x_pad[:, :, k * dilation:k * dilation + span:stride]
            for k in range(kernel_size)]                          # K static strided slices
    cols = jnp.stack(taps, axis=1).reshape(B, kernel_size * C, t_pad)
    if ck_pad > kernel_size * C:
        cols = jnp.pad(cols, ((0, 0), (0, ck_pad - kernel_size * C), (0, 0)))
    return cols


# -----------------------------------------------------------------------------
# Pallas kernel: tiled GEMM  out[b] = W_flat @ ELU?(cols[b]) + bias (+ residual)
# -----------------------------------------------------------------------------
def _conv_gemm_kernel(*refs, pre_elu, has_res):
    if has_res:
        cols_ref, w_ref, b_ref, res_ref, o_ref, acc_ref = refs
    else:
        cols_ref, w_ref, b_ref, o_ref, acc_ref = refs
        res_ref = None
    ik = pl.program_id(3)

    @pl.when(ik == 0)
    def _():
        acc_ref[...] = jnp.zeros_like(acc_ref)

    x = cols_ref[0]                                    # (ck_tile, t_tile)
    if pre_elu:
        # ELU(alpha=1): exp lands on the otherwise idle EUP slot.
        x = jnp.where(x > 0, x, jnp.exp(x) - 1.0)
    acc_ref[...] += jnp.dot(w_ref[...], x, preferred_element_type=jnp.float32)

    @pl.when(ik == pl.num_programs(3) - 1)
    def _():
        out = acc_ref[...] + b_ref[...]
        if has_res:
            out = out + res_ref[0].astype(jnp.float32)
        o_ref[0] = out.astype(o_ref.dtype)


def _conv_gemm_pallas(x_pad, w_flat, bias, *, kernel_size, stride, dilation,
                      out_dtype, pre_elu=False, residual=None):
    """x_pad: (B, C, L) already conv-padded & cast; w_flat: (C_out, K*C); bias: (C_out,)."""
    B, C, L = x_pad.shape
    c_out, CK = w_flat.shape
    assert CK == kernel_size * C
    in_dtype = x_pad.dtype
    in_itemsize = jnp.dtype(in_dtype).itemsize
    out_itemsize = jnp.dtype(out_dtype).itemsize
    has_res = residual is not None

    k_eff = (kernel_size - 1) * dilation + 1
    t_out = (L - k_eff) // stride + 1

    cap = _vmem_capacity_bytes()
    budget = int(cap * 0.6)
    co_tile, t_tile, ck_tile, vmem_est = _choose_tiling(
        CK, c_out, t_out, in_itemsize, out_itemsize, has_res, pre_elu, budget)

    co_pad = _round_up(c_out, co_tile)
    t_pad = _round_up(t_out, t_tile)
    ck_pad = ck_tile if ck_tile >= CK else _round_up(CK, ck_tile)

    cols = _im2col(x_pad, kernel_size, stride, dilation, t_pad, ck_pad)
    w_p = jnp.pad(w_flat, ((0, co_pad - c_out), (0, ck_pad - CK)))
    b_p = jnp.pad(bias.astype(jnp.float32), (0, co_pad - c_out)).reshape(co_pad, 1)

    inputs = [cols, w_p, b_p]
    in_specs = [
        pl.BlockSpec((1, ck_tile, t_tile), lambda b, io, it, ik: (b, ik, it)),
        pl.BlockSpec((co_tile, ck_tile), lambda b, io, it, ik: (io, ik)),
        pl.BlockSpec((co_tile, 1), lambda b, io, it, ik: (io, 0)),
    ]
    if has_res:
        assert residual.shape == (B, c_out, t_out), (residual.shape, (B, c_out, t_out))
        res_p = jnp.pad(residual.astype(out_dtype),
                        ((0, 0), (0, co_pad - c_out), (0, t_pad - t_out)))
        inputs.append(res_p)
        in_specs.append(pl.BlockSpec((1, co_tile, t_tile),
                                     lambda b, io, it, ik: (b, io, it)))

    grid = (B, co_pad // co_tile, t_pad // t_tile, ck_pad // ck_tile)
    n_co = grid[1]

    # Actual post-tiling traffic: cols re-streamed per C_out tile, weight per batch element
    # (resident across T tiles), output written once (+ residual read once).
    bytes_accessed = int(
        B * n_co * ck_pad * t_pad * in_itemsize
        + B * co_pad * ck_pad * in_itemsize
        + B * co_pad * t_pad * out_itemsize * (2 if has_res else 1)
        + co_pad * 4)
    cost = pl.CostEstimate(
        flops=int(2 * B * co_pad * ck_pad * t_pad),
        transcendentals=int(B * n_co * ck_pad * t_pad) if pre_elu else 0,
        bytes_accessed=bytes_accessed)

    vmem_limit = int(min(cap * 9 // 10, max(vmem_est + (4 << 20), 16 << 20)))

    kernel = functools.partial(_conv_gemm_kernel, pre_elu=pre_elu, has_res=has_res)

    out = pl.pallas_call(
        kernel,
        out_shape=jax.ShapeDtypeStruct((B, co_pad, t_pad), out_dtype),
        grid_spec=pltpu.PrefetchScalarGridSpec(
            num_scalar_prefetch=0,
            grid=grid,
            in_specs=in_specs,
            out_specs=pl.BlockSpec((1, co_tile, t_tile),
                                   lambda b, io, it, ik: (b, io, it)),
            scratch_shapes=[pltpu.VMEM((co_tile, t_tile), jnp.float32)],
        ),
        compiler_params=pltpu.CompilerParams(
            dimension_semantics=("parallel", "parallel", "parallel", "arbitrary"),
            vmem_limit_bytes=vmem_limit,
        ),
        cost_estimate=cost,
    )(*inputs)

    return out[:, :c_out, :t_out]


# -----------------------------------------------------------------------------
# SConv1d forward: pad (glue) + im2col (glue) + Pallas GEMM (hot path),
# with optionally fused input ELU and residual add.
# -----------------------------------------------------------------------------
def sconv1d_forward(x, weight, bias, *, kernel_size, stride=1, dilation=1,
                    causal=False, pad_mode="reflect", pre_elu=False, residual=None,
                    compute_dtype=jnp.float32):
    """SConv1d.forward. norm in {'none','weight_norm','spectral_norm'} is a weight
    parametrization only, so the forward equals a plain conv with the effective
    (C_out, C_in, K) weight passed here.  pre_elu fuses an ELU(alpha=1) applied to the
    input, residual fuses a post-conv add (both pointwise, so identical to applying them
    outside for reflect / zero padding).
    # TODO(synk): layer_norm / time_group_norm post-norm variants (non-default) not implemented.
    """
    c_out, c_in, K = weight.shape
    assert K == kernel_size and x.shape[1] == c_in
    out_dtype = x.dtype
    if x.dtype != compute_dtype:
        x = x.astype(compute_dtype)              # cast once, before pad / im2col
    x_pad = _sconv_pad(x, kernel_size, stride, dilation, causal, pad_mode)
    w_flat = jnp.transpose(weight, (0, 2, 1)).reshape(c_out, K * c_in).astype(compute_dtype)
    return _conv_gemm_pallas(x_pad, w_flat, bias, kernel_size=kernel_size, stride=stride,
                             dilation=dilation, out_dtype=out_dtype,
                             pre_elu=pre_elu, residual=residual)


# -----------------------------------------------------------------------------
# Reference SConv1d (plain JAX) for correctness checks
# -----------------------------------------------------------------------------
def sconv1d_reference(x, weight, bias, *, kernel_size, stride=1, dilation=1,
                      causal=False, pad_mode="reflect", pre_elu=False, residual=None,
                      compute_dtype=None):
    del compute_dtype
    if pre_elu:
        x = jax.nn.elu(x, 1.0)
    x_pad = _sconv_pad(x, kernel_size, stride, dilation, causal, pad_mode)
    out = jax.lax.conv_general_dilated(
        x_pad, weight, window_strides=(stride,), padding="VALID",
        rhs_dilation=(dilation,), dimension_numbers=("NCH", "OIH", "NCH"),
        precision=jax.lax.Precision.HIGHEST)
    out = out + bias.reshape(1, -1, 1)
    if residual is not None:
        out = out + residual
    return out


# -----------------------------------------------------------------------------
# SEANetEncoder convolutional stem (ELU + SConv1d / residual / downsample) built on
# the Pallas conv with fused ELU / skip-add.  The SLSTM / StreamingTransformerEncoder
# tail is not implemented here.
# -----------------------------------------------------------------------------
def _init_conv_params(key, c_in, c_out, k):
    kw, kb = jax.random.split(key)
    fan_in = c_in * k
    bound = 1.0 / math.sqrt(fan_in)
    w = jax.random.uniform(kw, (c_out, c_in, k), jnp.float32, -bound, bound)
    b = jax.random.uniform(kb, (c_out,), jnp.float32, -bound, bound)
    return w, b


def _make_stem_params(key, cfg):
    keys = iter(jax.random.split(key, 64))
    nf = cfg["n_filters"]
    mult = 1
    params = {"conv_in": _init_conv_params(next(keys), cfg["channels"], mult * nf,
                                           cfg["kernel_size"])}
    res, down = [], []
    for ratio in cfg["ratios"]:
        dim = mult * nf
        hidden = dim // cfg["compress"]
        blocks = []
        for _j in range(cfg["n_residual_layers"]):
            blocks.append({
                "c1": _init_conv_params(next(keys), dim, hidden, cfg["residual_kernel_size"]),
                "c2": _init_conv_params(next(keys), hidden, dim, 1),
                "skip": _init_conv_params(next(keys), dim, dim, 1),   # true_skip=False
            })
        res.append(blocks)
        down.append(_init_conv_params(next(keys), dim, dim * 2, 2 * ratio))
        mult *= 2
    params["res"] = res
    params["down"] = down
    params["conv_out"] = _init_conv_params(next(keys), mult * nf, cfg["dimension"],
                                           cfg["last_kernel_size"])
    return params


def seanet_encoder_stem_forward(x, params, cfg, conv_fn, compute_dtype=jnp.float32):
    c = cfg
    kw = dict(causal=c["causal"], pad_mode=c["pad_mode"], compute_dtype=compute_dtype)
    y = conv_fn(x, *params["conv_in"], kernel_size=c["kernel_size"], stride=1,
                dilation=1, **kw)
    for si, ratio in enumerate(c["ratios"]):
        for j in range(c["n_residual_layers"]):
            p = params["res"][si][j]
            # SEANetResnetBlock (true_skip=False): y = skip(y) + c2(ELU(c1(ELU(y)))).
            # Both ELUs and the skip add are fused into the Pallas conv calls.
            h = conv_fn(y, *p["c1"], kernel_size=c["residual_kernel_size"], stride=1,
                        dilation=c["dilation_base"] ** j, pre_elu=True, **kw)
            sc = conv_fn(y, *p["skip"], kernel_size=1, stride=1, dilation=1, **kw)
            y = conv_fn(h, *p["c2"], kernel_size=1, stride=1, dilation=1,
                        pre_elu=True, residual=sc, **kw)
        y = conv_fn(y, *params["down"][si], kernel_size=2 * ratio, stride=ratio,
                    dilation=1, pre_elu=True, **kw)
    # TODO(synk): SLSTM (nn.LSTM) and StreamingTransformerEncoder tail of SEANetEncoder
    #             are not implemented; only the convolutional stem runs through Pallas.
    y = conv_fn(y, *params["conv_out"], kernel_size=c["last_kernel_size"], stride=1,
                dilation=1, pre_elu=True, **kw)
    return y


# -----------------------------------------------------------------------------
# Tests
# -----------------------------------------------------------------------------
if __name__ == "__main__":
    key = jax.random.PRNGKey(0)
    k_stem, k1, k2, k3, k4, kx1, kx2, kx3, kx4, kxs = jax.random.split(key, 10)

    def _check_layer(kp, kx, *, B, c_in, c_out, K, T, stride=1, dilation=1, causal=False,
                     pad_mode="reflect", compute_dtype=jnp.float32, pre_elu=False,
                     with_residual=False, atol=2e-4, rtol=2e-4):
        w, b = _init_conv_params(kp, c_in, c_out, K)
        x = jax.random.normal(kx, (B, c_in, T), dtype=jnp.float32)
        residual = None
        if with_residual:
            shape_probe = sconv1d_reference(x, w, b, kernel_size=K, stride=stride,
                                            dilation=dilation, causal=causal,
                                            pad_mode=pad_mode)
            residual = jax.random.normal(jax.random.fold_in(kx, 1), shape_probe.shape,
                                         dtype=jnp.float32)
        out = sconv1d_forward(x, w, b, kernel_size=K, stride=stride, dilation=dilation,
                              causal=causal, pad_mode=pad_mode, pre_elu=pre_elu,
                              residual=residual, compute_dtype=compute_dtype)
        out = jax.block_until_ready(out)
        ref = sconv1d_reference(x, w, b, kernel_size=K, stride=stride, dilation=dilation,
                                causal=causal, pad_mode=pad_mode, pre_elu=pre_elu,
                                residual=residual)
        assert out.shape == ref.shape, (out.shape, ref.shape)
        err = float(jnp.max(jnp.abs(out - ref)))
        assert jnp.allclose(out, ref, atol=atol, rtol=rtol), err

    # small f32 layer: B=2, 4 -> 8 channels, T=16, K=3
    _check_layer(k1, kx1, B=2, c_in=4, c_out=8, K=3, T=16)
    # causal strided downsample-style layer: K = 2*stride
    _check_layer(k2, kx2, B=1, c_in=8, c_out=16, K=8, T=100, stride=4, causal=True)
    # dilated residual-style layer
    _check_layer(k3, kx3, B=2, c_in=8, c_out=4, K=3, T=50, dilation=2)
    # fused pre-ELU + residual add
    _check_layer(k4, kx4, B=2, c_in=4, c_out=4, K=3, T=32, pre_elu=True,
                 with_residual=True)
    # bf16 compute (f32 accumulation), loose tolerance
    _check_layer(k1, kx1, B=2, c_in=4, c_out=8, K=3, T=16,
                 compute_dtype=jnp.bfloat16, atol=1e-1, rtol=1e-1)

    # small SEANetEncoder conv stem: Pallas conv (fused ELU/skip) vs reference end-to-end
    cfg = dict(channels=1, n_filters=4, ratios=[2], n_residual_layers=1,
               kernel_size=7, last_kernel_size=7, residual_kernel_size=3,
               dilation_base=2, compress=2, dimension=16,
               causal=False, pad_mode="reflect")
    params = _make_stem_params(k_stem, cfg)
    x = jax.random.normal(kxs, (2, cfg["channels"], 64), dtype=jnp.float32)

    out = seanet_encoder_stem_forward(x, params, cfg, conv_fn=sconv1d_forward)
    out = jax.block_until_ready(out)
    ref = seanet_encoder_stem_forward(x, params, cfg, conv_fn=sconv1d_reference)
    assert out.shape == ref.shape == (2, cfg["dimension"], 32), out.shape
    assert jnp.allclose(out, ref, atol=5e-4, rtol=5e-4), \
        float(jnp.max(jnp.abs(out - ref)))

    print("KERNEL_OK")
</pallas_src>

<mosaic_0001>
module attributes {stable_mosaic.version = 11 : i64} {
  func.func @_conv_gemm_kernel(%arg0: i32, %arg1: i32, %arg2: i32, %arg3: i32, %arg4: memref<1x16x128xf32, #tpu.memory_space<vmem>>, %arg5: memref<8x16xf32, #tpu.memory_space<vmem>>, %arg6: memref<8x1xf32, #tpu.memory_space<vmem>>, %arg7: memref<1x8x128xf32, #tpu.memory_space<vmem>>, %arg8: memref<8x128xf32, #tpu.memory_space<vmem>>) attributes {dimension_semantics = [#tpu.dimension_semantics<parallel>, #tpu.dimension_semantics<parallel>, #tpu.dimension_semantics<parallel>, #tpu.dimension_semantics<arbitrary>], iteration_bounds = array<i64: 2, 1, 1, 1>, scalar_prefetch = 0 : i64, scratch_operands = 1 : i64, tpu.core_type = #tpu.core_type<tc>, window_params = [{transform_indices = @transform_0, window_bounds = array<i64: 1, 16, 128>}, {transform_indices = @transform_1, window_bounds = array<i64: 8, 16>}, {transform_indices = @transform_2, window_bounds = array<i64: 8, 1>}, {transform_indices = @transform_3, window_bounds = array<i64: 1, 8, 128>}]} {
    %c0_i32 = arith.constant 0 : i32
    %0 = arith.cmpi eq, %arg3, %c0_i32 : i32
    %1 = arith.extui %0 : i1 to i32
    %c0_i32_0 = arith.constant 0 : i32
    %2 = arith.cmpi ne, %1, %c0_i32_0 : i32
    scf.if %2 {
      %cst_11 = arith.constant 0.000000e+00 : f32
      %13 = vector.broadcast %cst_11 : f32 to vector<8x128xf32>
      %c0_12 = arith.constant 0 : index
      %c0_13 = arith.constant 0 : index
      %14 = vector.load %arg8[%c0_12, %c0_13] : memref<8x128xf32, #tpu.memory_space<vmem>>, vector<8x128xf32>
      tpu.vector_store %arg8[%c0_12, %c0_13], %13 {strides = array<i32>} : memref<8x128xf32, #tpu.memory_space<vmem>>, vector<8x128xf32>,
    } else {
    }
    %c0 = arith.constant 0 : index
    %c0_1 = arith.constant 0 : index
    %c0_2 = arith.constant 0 : index
    %3 = vector.load %arg4[%c0, %c0_1, %c0_2] : memref<1x16x128xf32, #tpu.memory_space<vmem>>, vector<1x16x128xf32>
    %4 = vector.shape_cast %3 : vector<1x16x128xf32> to vector<16x128xf32>
    %c0_3 = arith.constant 0 : index
    %c0_4 = arith.constant 0 : index
    %5 = vector.load %arg8[%c0_3, %c0_4] : memref<8x128xf32, #tpu.memory_space<vmem>>, vector<8x128xf32>
    %c0_5 = arith.constant 0 : index
    %c0_6 = arith.constant 0 : index
    %6 = vector.load %arg5[%c0_5, %c0_6] : memref<8x16xf32, #tpu.memory_space<vmem>>, vector<8x16xf32>
    %cst = arith.constant dense<0.000000e+00> : vector<8x128xf32>
    %7 = tpu.matmul %6, %4, %cst {dimension_numbers = #tpu.dot_dimension_numbers<[1], [0], [0], [1], [0, 0, 1, 1], [], []>} : vector<8x16xf32>, vector<16x128xf32>, vector<8x128xf32> -> vector<8x128xf32>
    %8 = arith.addf %5, %7 : vector<8x128xf32>
    %c0_7 = arith.constant 0 : index
    %c0_8 = arith.constant 0 : index
    %9 = vector.load %arg8[%c0_7, %c0_8] : memref<8x128xf32, #tpu.memory_space<vmem>>, vector<8x128xf32>
    tpu.vector_store %arg8[%c0_7, %c0_8], %8 {strides = array<i32>} : memref<8x128xf32, #tpu.memory_space<vmem>>, vector<8x128xf32>,
    %c0_i32_9 = arith.constant 0 : i32
    %10 = arith.cmpi eq, %arg3, %c0_i32_9 : i32
    %11 = arith.extui %10 : i1 to i32
    %c0_i32_10 = arith.constant 0 : i32
    %12 = arith.cmpi ne, %11, %c0_i32_10 : i32
    scf.if %12 {
      %c0_11 = arith.constant 0 : index
      %c0_12 = arith.constant 0 : index
      %13 = vector.load %arg8[%c0_11, %c0_12] : memref<8x128xf32, #tpu.memory_space<vmem>>, vector<8x128xf32>
      %c0_13 = arith.constant 0 : index
      %c0_14 = arith.constant 0 : index
      %14 = vector.load %arg6[%c0_13, %c0_14] : memref<8x1xf32, #tpu.memory_space<vmem>>, vector<8x1xf32>
      %15 = vector.broadcast %14 : vector<8x1xf32> to vector<8x128xf32>
      %16 = arith.addf %13, %15 : vector<8x128xf32>
      %c0_15 = arith.constant 0 : index
      %c0_16 = arith.constant 0 : index
      %c0_17 = arith.constant 0 : index
      %17 = vector.load %arg7[%c0_15, %c0_16, %c0_17] : memref<1x8x128xf32, #tpu.memory_space<vmem>>, vector<1x8x128xf32>
      %18 = vector.shape_cast %17 : vector<1x8x128xf32> to vector<8x128xf32>
      %19 = vector.shape_cast %16 : vector<8x128xf32> to vector<1x8x128xf32>
      tpu.vector_store %arg7[%c0_15, %c0_16, %c0_17], %19 {strides = array<i32>} : memref<1x8x128xf32, #tpu.memory_space<vmem>>, vector<1x8x128xf32>,
    } else {
    }
    return
  }
  func.func @transform_0(%arg0: i32, %arg1: i32, %arg2: i32, %arg3: i32) -> (i32, i32, i32) {
    %c0_i32 = arith.constant 0 : i32
    return %arg0, %arg3, %arg2 : i32, i32, i32
  }
  func.func @transform_1(%arg0: i32, %arg1: i32, %arg2: i32, %arg3: i32) -> (i32, i32) {
    %c0_i32 = arith.constant 0 : i32
    return %arg1, %arg3 : i32, i32
  }
  func.func @transform_2(%arg0: i32, %arg1: i32, %arg2: i32, %arg3: i32) -> (i32, i32) {
    %c0_i32 = arith.constant 0 : i32
    %c0_i32_0 = arith.constant 0 : i32
    return %arg1, %c0_i32 : i32, i32
  }
  func.func @transform_3(%arg0: i32, %arg1: i32, %arg2: i32, %arg3: i32) -> (i32, i32, i32) {
    %c0_i32 = arith.constant 0 : i32
    return %arg0, %arg1, %arg2 : i32, i32, i32
  }
}

</mosaic_0001>

<llo_original>
// kernel: tpu_custom_call.1
$region0: #{tpu_custom_call.1}
  #allocation0 [shape = 'u32[]', space=smem, size = 0x4, offset = 0x4, fixed_abs, tag = 'smem constant byte address 0x4 - core index']
  #allocation1 [shape = 'u32[144,128]{1,0:T(1,128)}', space=vmem, size = 0x12000, scoped, tag = 'internal scratch']
  #allocation2 [shape = 'f32[8,128]{1,0:T(8,128)}', space=vmem, size = 0x1000, scoped, tag = 'scratch operand']
  %s0 = inlined_call_operand.hbm [shape: f32[2,16,128], index: 0, kind: input, shape index: {}]
  %s1 = inlined_call_operand.vmem [shape: f32[8,16], index: 1, kind: input, shape index: {}]
  %s2 = inlined_call_operand.vmem [shape: f32[8,1], index: 2, kind: input, shape index: {}]
  %s3 = inlined_call_operand.hbm [shape: f32[2,8,128], index: 3, kind: output, shape index: {}]
  %s4 = sld [smem:[#allocation0]]
  $region57: #{tpu_custom_call.1} parent=0
    _
  %s6 = ssub.s32 1, %s4
  %s7 = scalar_select 0, %s6, %s4
  $region1: #{tpu_custom_call.1} parent=0
    #allocation3 [shape = 'u8[16384]{0}', space=vmem, size = 0x4000, scoped, tag = 'input window, operand 0']
    #allocation4 [shape = 's32[2]{0}', space=sflag, size = 0x8, scoped, tag = 'scoped memory for tpu_custom_call.1']
    #allocation5 [shape = 's32[2]{0}', space=sflag, size = 0x8, scoped, tag = 'scoped memory for tpu_custom_call.1']
    #allocation6 [shape = 'u8[8192]{0}', space=vmem, size = 0x2000, scoped, tag = 'output window, operand 0']
    %8 = vsyncpa [#allocation4], 0
    %s9 = scalar_lea.sflag [#allocation4], 1
    %10 = vsyncpa %s9, 0
    %11 = vsyncpa [#allocation5], 0
    %s12 = scalar_lea.sflag [#allocation5], 1
    %13 = vsyncpa %s12, 0
    loop: start=0, step=1, limit=4
    $region2: #{tpu_custom_call.1} parent=1 // loop_pre_header
      _
    $region3: #{tpu_custom_call.1} parent=1 // loop_header
      %s15 = sphi 0, %s19
      %p16 = scmp.ge.s32.totalorder %s15, 4
      %s22 = sphi 0, %s48
      %s23 = sphi 0, %s44
      %s24 = sphi 0, %s40
      %s25 = sphi 0, %s36
      %s26 = sphi 0, %s22
      %s27 = sphi 0, %s23
      %s28 = sphi 0, %s24
      %s29 = sphi 0, %s25
      %s30 = sphi 0, %s26
      %s31 = sphi 0, %s27
      %s32 = sphi 0, %s28
      %s33 = sphi 0, %s29
      %s55 = sphi 0, %s57
      %s58 = sphi 0, %s55
      %s59 = sphi 0, %s58
      %s75 = sphi 0, %s59
      %s83 = sphi 0, %s85
      %s86 = sphi 0, %s83
      %s87 = sphi 0, %s86
      %s103 = sphi 0, %s87
      %s109 = sphi 0, %s111
      %s112 = sphi 0, %s109
      %s113 = sphi 0, %s112
      %s129 = sphi 0, %s113
      %s139 = sphi 0, %s141
      %s142 = sphi 0, %s139
      %s143 = sphi 0, %s142
      %s159 = sphi 0, %s143
    $region4: #{tpu_custom_call.1} parent=1 // loop_header_branch
      %18 = sbr.rel (%p16) target = $region8
    $region5: #{tpu_custom_call.1} parent=1 // loop_body
      %s20 = ssub.s32 %s15, 1
      %s21 = ssub.s32 %s15, 2
      %s34 = sadd.s32 1, %s25
      %p35 = scmp.ge.s32.totalorder %s34, 1
      %s36 = scalar_select %p35, 0, %s34
      %s37 = sadd.s32 1, %s24
      %s38 = scalar_select %p35, %s37, %s24
      %p39 = scmp.ge.s32.totalorder %s38, 1
      %s40 = scalar_select %p39, 0, %s38
      %s41 = sadd.s32 1, %s23
      %s42 = scalar_select %p39, %s41, %s23
      %p43 = scmp.ge.s32.totalorder %s42, 1
      %s44 = scalar_select %p43, 0, %s42
      %s45 = sadd.s32 1, %s22
      %s46 = scalar_select %p43, %s45, %s22
      %p47 = scmp.ge.s32.totalorder %s46, 2
      %s48 = scalar_select %p47, 0, %s46
      %s49 = ssub.s32 %s22, %s48
      %s50 = ssub.s32 %s25, %s36
      %s51 = sor.u32 %s49, %s50
      %s52 = ssub.s32 %s24, %s40
      %s53 = sor.u32 %s51, %s52
      %p54 = scmp.eq.s32.totalorder %s53, 0
      %s56 = sadd.s32 %s55, 1
      %s57 = scalar_select %p54, %s55, %s56
      %p60 = pneg %p54
      %p61 = scmp.eq.s32.totalorder %s15, 1
      %p62 = por %p60, %p61
      %p63 = scmp.ne.s32.totalorder %s55, %s58
      %p64 = scmp.eq.s32.totalorder %s15, 0
      %p65 = por %p63, %p64
      %p66 = scmp.ne.s32.totalorder %s55, %s58
      %p67 = scmp.eq.s32.totalorder %s20, 1
      %p68 = por %p66, %p67
      %p69 = scmp.ne.s32.totalorder %s58, %s59
      %p70 = scmp.eq.s32.totalorder %s20, 0
      %p71 = por %p69, %p70
      %p72 = scmp.ne.s32.totalorder %s58, %s59
      %p73 = scmp.eq.s32.totalorder %s21, 1
      %p74 = por %p72, %p73
      %p76 = scmp.ne.s32.totalorder %s59, %s75
      %p77 = scmp.eq.s32.totalorder %s21, 0
      %p78 = por %p76, %p77
      %s79 = ssub.s32 %s23, %s44
      %s80 = ssub.s32 %s25, %s36
      %s81 = sor.u32 %s79, %s80
      %p82 = scmp.eq.s32.totalorder %s81, 0
      %s84 = sadd.s32 %s83, 1
      %s85 = scalar_select %p82, %s83, %s84
      %p88 = pneg %p82
      %p89 = scmp.eq.s32.totalorder %s15, 1
      %p90 = por %p88, %p89
      %p91 = scmp.ne.s32.totalorder %s83, %s86
      %p92 = scmp.eq.s32.totalorder %s15, 0
      %p93 = por %p91, %p92
      %p94 = scmp.ne.s32.totalorder %s83, %s86
      %p95 = scmp.eq.s32.totalorder %s20, 1
      %p96 = por %p94, %p95
      %p97 = scmp.ne.s32.totalorder %s86, %s87
      %p98 = scmp.eq.s32.totalorder %s20, 0
      %p99 = por %p97, %p98
      %p100 = scmp.ne.s32.totalorder %s86, %s87
      %p101 = scmp.eq.s32.totalorder %s21, 1
      %p102 = por %p100, %p101
      %p104 = scmp.ne.s32.totalorder %s87, %s103
      %p105 = scmp.eq.s32.totalorder %s21, 0
      %p106 = por %p104, %p105
      %s107 = ssub.s32 %s23, %s44
      %p108 = scmp.eq.s32.totalorder %s107, 0
      %s110 = sadd.s32 %s109, 1
      %s111 = scalar_select %p108, %s109, %s110
      %p114 = pneg %p108
      %p115 = scmp.eq.s32.totalorder %s15, 1
      %p116 = por %p114, %p115
      %p117 = scmp.ne.s32.totalorder %s109, %s112
      %p118 = scmp.eq.s32.totalorder %s15, 0
      %p119 = por %p117, %p118
      %p120 = scmp.ne.s32.totalorder %s109, %s112
      %p121 = scmp.eq.s32.totalorder %s20, 1
      %p122 = por %p120, %p121
      %p123 = scmp.ne.s32.totalorder %s112, %s113
      %p124 = scmp.eq.s32.totalorder %s20, 0
      %p125 = por %p123, %p124
      %p126 = scmp.ne.s32.totalorder %s112, %s113
      %p127 = scmp.eq.s32.totalorder %s21, 1
      %p128 = por %p126, %p127
      %p130 = scmp.ne.s32.totalorder %s113, %s129
      %p131 = scmp.eq.s32.totalorder %s21, 0
      %p132 = por %p130, %p131
      %s133 = ssub.s32 %s22, %s48
      %s134 = ssub.s32 %s23, %s44
      %s135 = sor.u32 %s133, %s134
      %s136 = ssub.s32 %s24, %s40
      %s137 = sor.u32 %s135, %s136
      %p138 = scmp.eq.s32.totalorder %s137, 0
      %s140 = sadd.s32 %s139, 1
      %s141 = scalar_select %p138, %s139, %s140
      %p144 = pneg %p138
      %p145 = scmp.eq.s32.totalorder %s15, 1
      %p146 = por %p144, %p145
      %p147 = scmp.ne.s32.totalorder %s139, %s142
      %p148 = scmp.eq.s32.totalorder %s15, 0
      %p149 = por %p147, %p148
      %p150 = scmp.ne.s32.totalorder %s139, %s142
      %p151 = scmp.eq.s32.totalorder %s20, 1
      %p152 = por %p150, %p151
      %p153 = scmp.ne.s32.totalorder %s142, %s143
      %p154 = scmp.eq.s32.totalorder %s20, 0
      %p155 = por %p153, %p154
      %p156 = scmp.ne.s32.totalorder %s142, %s143
      %p157 = scmp.eq.s32.totalorder %s21, 1
      %p158 = por %p156, %p157
      %p160 = scmp.ne.s32.totalorder %s143, %s159
      %p161 = scmp.eq.s32.totalorder %s21, 0
      %p162 = por %p160, %p161
      %p163 = scmp.le.s32.totalorder 1, %s15
      %p164 = scmp.lt.s32.totalorder %s15, 3
      %p165 = pnand %p163, %p164
      %p166 = pneg %p165
      // Predicated region
      $region9: #{tpu_custom_call.1} parent=5 // pred_check
        _
      $region10: #{tpu_custom_call.1} parent=5 // pred_check_branch
        %168 = sbr.rel (%p165) target = $region12
      $region11: #{tpu_custom_call.1} parent=5 // pred_region
        %s169 = ssub.s32 %s15, 1
        // Predicated region
        $region13: #{tpu_custom_call.1} parent=11 // pred_check
          %p170 = pneg %p99
        $region14: #{tpu_custom_call.1} parent=11 // pred_check_branch
          %172 = sbr.rel (%p170) target = $region16
        $region15: #{tpu_custom_call.1} parent=11 // pred_region
          %p173 = scmp.lt.s32.totalorder %s27, 0
          %s174 = scalar_select %p173, %s27, 0
          %p175 = scmp.lt.s32.totalorder %s29, 0
          %s176 = scalar_select %p175, %s29, 0
          %s177 = sadd.s32 %s176, %s174
          %s178 = smul.addr %s177, 8
          %s179 = scalar_lea.vmem %s1, %s178
        $region16: #{tpu_custom_call.1} parent=11 // pred_fallthru
          _
        // Predicated region
        $region17: #{tpu_custom_call.1} parent=11 // pred_check
          %p180 = pneg %p125
        $region18: #{tpu_custom_call.1} parent=11 // pred_check_branch
          %182 = sbr.rel (%p180) target = $region20
        $region19: #{tpu_custom_call.1} parent=11 // pred_region
          %p183 = scmp.lt.s32.totalorder %s27, 0
          %s184 = scalar_select %p183, %s27, 0
          %s185 = smul.addr %s184, 8
          %s186 = scalar_lea.vmem %s2, %s185
        $region20: #{tpu_custom_call.1} parent=11 // pred_fallthru
          _
      $region12: #{tpu_custom_call.1} parent=5 // pred_fallthru
        _
      %p187 = scmp.lt.s32.totalorder %s15, 2
      // Predicated region
      $region21: #{tpu_custom_call.1} parent=5 // pred_check
        %p188 = pneg %p187
      $region22: #{tpu_custom_call.1} parent=5 // pred_check_branch
        %190 = sbr.rel (%p188) target = $region24
      $region23: #{tpu_custom_call.1} parent=5 // pred_region
        // Predicated region
        $region25: #{tpu_custom_call.1} parent=23 // pred_check
          %p191 = pneg %p65
        $region26: #{tpu_custom_call.1} parent=23 // pred_check_branch
          %193 = sbr.rel (%p191) target = $region28
        $region27: #{tpu_custom_call.1} parent=23 // pred_region
          %s194 = sand.u32 %s55, 1
          %s195 = scalar_lea.sflag [#allocation4], %s194
          %s196 = sand.u32 %s55, 1
          %s197 = smul.addr %s196, 16
          %s198 = scalar_lea.vmem [#allocation3], %s197
          %s199 = smul.u32 2, %s25
          %s201 = ssub.s32 256, 256
          %202 = vsyncadd %s195, %s201
          %s203 = sadd.s32 %s24, %s199
          %s204 = smul.addr %s22, 2
          %s205 = sadd.s32 %s203, %s204
          %s206 = smul.addr %s205, 128
          %s207 = scalar_lea.hbm %s0, %s206
          %s208 = sshll.u32 %s198, 4
          %s209 = int_to_ptr.vmem [resolvable:$true] %s208
          %214 = dma.hbm_to_vmem [thread:$0]  %s207, 256, %s209, %s195, 128, 128, 8
        $region28: #{tpu_custom_call.1} parent=23 // pred_fallthru
          _
      $region24: #{tpu_custom_call.1} parent=5 // pred_fallthru
        _
      %p215 = scmp.le.s32.totalorder 1, %s15
      %p216 = scmp.lt.s32.totalorder %s15, 3
      %p217 = pnand %p215, %p216
      %p218 = pneg %p217
      // Predicated region
      $region29: #{tpu_custom_call.1} parent=5 // pred_check
        _
      $region30: #{tpu_custom_call.1} parent=5 // pred_check_branch
        %220 = sbr.rel (%p217) target = $region32
      $region31: #{tpu_custom_call.1} parent=5 // pred_region
        %s221 = ssub.s32 %s15, 1
        %s222 = sand.u32 %s58, 1
        %s223 = scalar_lea.sflag [#allocation4], %s222
        %s224 = sand.u32 %s58, 1
        %s225 = smul.addr %s224, 16
        %s226 = scalar_lea.vmem [#allocation3], %s225
        // Predicated region
        $region33: #{tpu_custom_call.1} parent=31 // pred_check
          %p227 = pneg %p71
        $region34: #{tpu_custom_call.1} parent=31 // pred_check_branch
          %229 = sbr.rel (%p227) target = $region36
        $region35: #{tpu_custom_call.1} parent=31 // pred_region
          %230 = dma.done %s223, 256
        $region36: #{tpu_custom_call.1} parent=31 // pred_fallthru
          _
        %s231 = sand.u32 %s58, 1
        %s232 = scalar_lea.sflag [#allocation4], %s231
        %s233 = sand.u32 %s58, 1
        %s234 = smul.addr %s233, 16
        %s235 = scalar_lea.vmem [#allocation3], %s234
        %p236 = pneg %p71
        %p237 = pneg %p68
        %p238 = scmp.lt.s32.totalorder %s27, 0
        %s239 = scalar_select %p238, %s27, 0
        %p240 = scmp.lt.s32.totalorder %s29, 0
        %s241 = scalar_select %p240, %s29, 0
        %s242 = sadd.s32 %s241, %s239
        %s243 = smul.addr %s242, 8
        %s244 = scalar_lea.vmem %s1, %s243
        %p245 = pneg %p99
        %p246 = pneg %p96
        %p247 = scmp.lt.s32.totalorder %s27, 0
        %s248 = scalar_select %p247, %s27, 0
        %s249 = smul.addr %s248, 8
        %s250 = scalar_lea.vmem %s2, %s249
        %p251 = pneg %p125
        %p252 = pneg %p122
        %p253 = pneg %p155
        %p254 = pneg %p152
        %s255 = sand.u32 %s142, 1
        %s256 = scalar_lea.sflag [#allocation5], %s255
        %s257 = sand.u32 %s142, 1
        %s258 = smul.addr %s257, 8
        %s259 = scalar_lea.vmem [#allocation6], %s258
        %s260 = smul.u32 2, %s29
        %p261 = scmp.lt.s32.totalorder %s27, 0
        %s262 = scalar_select %p261, %s27, 0
        %p263 = scmp.lt.s32.totalorder %s29, 0
        %s264 = scalar_select %p263, %s29, 0
        %s265 = sadd.s32 %s264, %s262
        %s266 = smul.addr %s265, 8
        %s267 = scalar_lea.vmem %s1, %s266
        %p268 = scmp.lt.s32.totalorder %s27, 0
        %s269 = scalar_select %p268, %s27, 0
        %s270 = smul.addr %s269, 8
        %s271 = scalar_lea.vmem %s2, %s270
        %p272 = scmp.eq.s32.totalorder %s29, 0
        // Predicated region
        $region37: #{tpu_custom_call.1} parent=31 // pred_check
          %p273 = pneg %p272
        $region38: #{tpu_custom_call.1} parent=31 // pred_check_branch
          %275 = sbr.rel (%p273) target = $region40
        $region39: #{tpu_custom_call.1} parent=31 // pred_region
          %276 = vst [vmem:[#allocation2] sm:$0xff] 0.0
        $region40: #{tpu_custom_call.1} parent=31 // pred_fallthru
          _
        %v277 = vld [vmem:[%s226] sm:$0xff]
        %v278 = vld [vmem:[%s226 + $0x8] sm:$0xff]
        %v279 = vld [vmem:[#allocation2] sm:$0xff]
        %v280 = vld [vmem:[%s267] sm:$0xff]
        %vm281 = vcmask 130048
        %v283 = vsel %vm281, %v280, 0
        %285 = vmatprep.subr.mxu0 0.0
        %286 = vmatpush1.msra.mxu0 %v277
        %287 = vmatprep.subr.mxu0 0.0
        %288 = vmatpush1.msra.mxu0 %v278
        %289 = vmatprep.subr.mxu0 0.0
        %290 = vmatpush1.msra.mxu0 0.0
        %291 = vmatprep.subr.mxu0 0.0
        %292 = vmatpush1.msra.mxu0 0.0
        %293 = vmatprep.subr.mxu0 0.0
        %294 = vmatpush1.msra.mxu0 0.0
        %295 = vmatprep.subr.mxu0 0.0
        %296 = vmatpush1.msra.mxu0 0.0
        %297 = vmatprep.subr.mxu0 0.0
        %298 = vmatpush1.msra.mxu0 0.0
        %299 = vmatprep.subr.mxu0 0.0
        %300 = vmatpush1.msra.mxu0 0.0
        %301 = vmatprep.subr.mxu0 0.0
        %302 = vmatpush1.msra.mxu0 0.0
        %303 = vmatprep.subr.mxu0 0.0
        %304 = vmatpush1.msra.mxu0 0.0
        %305 = vmatprep.subr.mxu0 0.0
        %306 = vmatpush1.msra.mxu0 0.0
        %307 = vmatprep.subr.mxu0 0.0
        %308 = vmatpush1.msra.mxu0 0.0
        %309 = vmatprep.subr.mxu0 0.0
        %310 = vmatpush1.msra.mxu0 0.0
        %311 = vmatprep.subr.mxu0 0.0
        %312 = vmatpush1.msra.mxu0 0.0
        %313 = vmatprep.subr.mxu0 0.0
        %314 = vmatpush1.msra.mxu0 0.0
        %315 = vmatprep.subr.mxu0 0.0
        %316 = vmatpush1.msra.mxu0 0.0
        %317 = vmatprep.subr.mxu0 0.0
        %318 = vmatpush1.msra.mxu0 0.0
        %319 = vmatprep.subr.mxu0 0.0
        %320 = vmatpush1.msra.mxu0 0.0
        %321 = vmatprep.subr.mxu0 0.0
        %322 = vmatpush1.msra.mxu0 0.0
        %323 = vmatprep.subr.mxu0 0.0
        %324 = vmatpush1.msra.mxu0 0.0
        %325 = vmatprep.subr.mxu0 0.0
        %326 = vmatpush1.msra.mxu0 0.0
        %327 = vmatprep.subr.mxu0 0.0
        %328 = vmatpush1.msra.mxu0 0.0
        %329 = vmatprep.subr.mxu0 0.0
        %330 = vmatpush1.msra.mxu0 0.0
        %331 = vmatprep.subr.mxu0 0.0
        %332 = vmatpush1.msra.mxu0 0.0
        %333 = vmatprep.subr.mxu0 0.0
        %334 = vmatpush1.msra.mxu0 0.0
        %335 = vmatprep.subr.mxu0 0.0
        %336 = vmatpush1.msra.mxu0 0.0
        %337 = vmatprep.subr.mxu0 0.0
        %338 = vmatpush1.msra.mxu0 0.0
        %339 = vmatprep.subr.mxu0 0.0
        %340 = vmatpush1.msra.mxu0 0.0
        %341 = vmatprep.subr.mxu0 0.0
        %342 = vmatpush1.msra.mxu0 0.0
        %343 = vmatprep.subr.mxu0 0.0
        %344 = vmatpush1.msra.mxu0 0.0
        %345 = vmatprep.subr.mxu0 0.0
        %346 = vmatpush1.msra.mxu0 0.0
        %347 = vmatprep.subr.mxu0 0.0
        %348 = vmatpush1.msra.mxu0 0.0
        %349 = vmatprep.mubr.f32.mxu0 0.0
        %350 = vmatmul.mubr.f32.gmra.mrb[0].mxu0 %v283
        %v351 = vpop.f32.mrb[0].mxu0
        %v352 = vadd.f32 0.0, %v351
        %v353 = vpop.f32.mrb[0].mxu0
        %354 = vdwg.mxu0
        %v355 = vadd.f32 %v279, %v352
        %356 = vst [vmem:[#allocation2] sm:$0xff] %v355
        // Predicated region
        $region41: #{tpu_custom_call.1} parent=31 // pred_check
          %p357 = pneg %p272
        $region42: #{tpu_custom_call.1} parent=31 // pred_check_branch
          %359 = sbr.rel (%p357) target = $region44
        $region43: #{tpu_custom_call.1} parent=31 // pred_region
          %v360 = vld [vmem:[#allocation2] sm:$0xff]
          %v361 = vld [vmem:[%s271] sm:$0xff]
          %363 = vset.pattern.permute.xlu0 0
          %364 = vperm.xlu0 %363, %v361
          %v365 = vpop.permute.xlu0 %364
          %v367 = vadd.f32 %v360, %v365
          %368 = vst [vmem:[%s259] sm:$0xff] %v367
        $region44: #{tpu_custom_call.1} parent=31 // pred_fallthru
          _
        %s369 = sand.u32 %s142, 1
        %s370 = scalar_lea.sflag [#allocation5], %s369
        %s371 = sand.u32 %s142, 1
        %s372 = smul.addr %s371, 8
        %s373 = scalar_lea.vmem [#allocation6], %s372
        // Predicated region
        $region45: #{tpu_custom_call.1} parent=31 // pred_check
          %p374 = pneg %p152
        $region46: #{tpu_custom_call.1} parent=31 // pred_check_branch
          %376 = sbr.rel (%p374) target = $region48
        $region47: #{tpu_custom_call.1} parent=31 // pred_region
          %s378 = ssub.s32 128, 128
          %379 = vsyncadd %s370, %s378
          %s380 = sadd.s32 %s28, %s27
          %s381 = sadd.s32 %s380, %s26
          %s382 = smul.addr %s381, 128
          %s383 = scalar_lea.hbm %s3, %s382
          %s385 = sshll.u32 %s373, 4
          %s386 = int_to_ptr.vmem [resolvable:$true] %s385
          %388 = dma.vmem_to_hbm [thread:$0]  %s386, 128, %s383, %s370
        $region48: #{tpu_custom_call.1} parent=31 // pred_fallthru
          _
      $region32: #{tpu_custom_call.1} parent=5 // pred_fallthru
        _
      %p389 = scmp.le.s32.totalorder 2, %s15
      // Predicated region
      $region49: #{tpu_custom_call.1} parent=5 // pred_check
        %p390 = pneg %p389
      $region50: #{tpu_custom_call.1} parent=5 // pred_check_branch
        %392 = sbr.rel (%p390) target = $region52
      $region51: #{tpu_custom_call.1} parent=5 // pred_region
        %s393 = ssub.s32 %s15, 2
        // Predicated region
        $region53: #{tpu_custom_call.1} parent=51 // pred_check
          %p394 = pneg %p158
        $region54: #{tpu_custom_call.1} parent=51 // pred_check_branch
          %396 = sbr.rel (%p394) target = $region56
        $region55: #{tpu_custom_call.1} parent=51 // pred_region
          %s397 = sand.u32 %s143, 1
          %s398 = scalar_lea.sflag [#allocation5], %s397
          %s399 = sand.u32 %s143, 1
          %s400 = smul.addr %s399, 8
          %s401 = scalar_lea.vmem [#allocation6], %s400
          %402 = dma.done %s398, 128
        $region56: #{tpu_custom_call.1} parent=51 // pred_fallthru
          _
      $region52: #{tpu_custom_call.1} parent=5 // pred_fallthru
        _
    $region6: #{tpu_custom_call.1} parent=1 // loop_footer
      %s19 = sadd.s32 1, %s15
    $region7: #{tpu_custom_call.1} parent=1 // loop_footer_branch
      %14 = sbr.rel target = $region3
    $region8: #{tpu_custom_call.1} parent=1 // loop_exit
      _
    %403 = vsyncpa [#allocation4], 1
    %s404 = scalar_lea.sflag [#allocation4], 1
    %405 = vsyncpa %s404, 1
    %406 = vsyncpa [#allocation5], 1
    %s407 = scalar_lea.sflag [#allocation5], 1
    %408 = vsyncpa %s407, 1

</llo_original>
